<compile_context>
chip_gen: v5e
topology: v5e:2x2
jax: 0.10.0
libtpu: 0.0.40
codegen_flags: <defaults>
</compile_context>

<pallas_src>
import jax
import jax.numpy as jnp
from jax import lax
from jax.experimental import pallas as pl
from jax.experimental.pallas import tpu as pltpu

LN_EPS = 1e-5                       # torch.nn.LayerNorm default
_MAX_HW_TILE = 2048                 # lane-dense pixel-tile upper bound
_X_VMEM_BUDGET = 8 * 1024 * 1024    # budget for double-buffered x tiles (all levels)


def _build_kernel(num_levels, hw, hw_tile, num_hw_tiles):
    """Fused attention-pool + channel_add_conv kernel for `num_levels` inputs."""
    needs_mask = (hw % hw_tile) != 0

    def kernel(*refs):
        i = 0
        x_refs = refs[i:i + num_levels]; i += num_levels            # (C_l, hw_tile)
        wm_refs = refs[i:i + num_levels]; i += num_levels           # (C_l, 1)
        w1t_refs = refs[i:i + num_levels]; i += num_levels          # (C_l, planes)
        bm_ref, b1_ref, g_ref, beta_ref, w2_ref, b2_ref = refs[i:i + 6]; i += 6
        o_ref = refs[i]; i += 1                                     # (Cout, 1)
        m_sc, l_sc = refs[i], refs[i + 1]; i += 2                   # (1, 1) each
        acc_refs = refs[i:i + num_levels]                           # (C_l, 1)

        t = pl.program_id(1)

        @pl.when(t == 0)
        def _init():
            m_sc[...] = jnp.full_like(m_sc, -jnp.inf)
            l_sc[...] = jnp.zeros_like(l_sc)
            for acc in acc_refs:
                acc[...] = jnp.zeros_like(acc)

        # Single HBM pass over x per tile; do the math in f32 in-register
        # (v5e's VPU has no bf16; MXU is not needed for these tiny contractions).
        x_tiles = [x_ref[...].astype(jnp.float32) for x_ref in x_refs]

        # conv_mask logits for this tile: exact f32 multiply + sublane reduce,
        # summed across levels (virtual channel concat).
        logits = None
        for x, wm in zip(x_tiles, wm_refs):
            part = jnp.sum(x * wm[...], axis=0, keepdims=True)      # (1, hw_tile)
            logits = part if logits is None else logits + part
        logits = logits + bm_ref[...]                               # + conv_mask bias

        if needs_mask:
            lane = lax.broadcasted_iota(jnp.int32, logits.shape, 1)
            in_bounds = lane < (hw - t * hw_tile)
            logits = jnp.where(in_bounds, logits, -jnp.inf)

        # Online-softmax update, fused with the weighted pooling below so x is
        # streamed from HBM exactly once.
        m_prev = m_sc[...]
        m_new = jnp.maximum(m_prev, jnp.max(logits, axis=-1, keepdims=True))
        alpha = jnp.exp(m_prev - m_new)                             # (1, 1)
        e = jnp.exp(logits - m_new)                                 # (1, hw_tile)
        l_sc[...] = alpha * l_sc[...] + jnp.sum(e, axis=-1, keepdims=True)
        m_sc[...] = m_new

        for x, acc in zip(x_tiles, acc_refs):
            w = x * e                                               # (C_l, hw_tile)
            if needs_mask:
                w = jnp.where(in_bounds, w, 0.0)   # kill garbage in padded lanes
            acc[...] = alpha * acc[...] + jnp.sum(w, axis=-1, keepdims=True)

        # channel_add_conv tail: once per sample, on the last HW tile.  Weights
        # have constant index maps -> fetched once, resident in VMEM.
        @pl.when(t == num_hw_tiles - 1)
        def _finalize():
            # Exact reciprocal: runs once per sample outside the HW streaming
            # loop, so approx=True buys nothing and exact keeps 1e-4 parity.
            inv_l = pl.reciprocal(l_sc[...], approx=False)          # (1, 1)

            # conv1 (1x1, C -> planes): y[p] = sum_c ctx[c] * W1[p, c] + b1[p]
            y = b1_ref[...]                                         # (1, planes)
            for acc, w1t in zip(acc_refs, w1t_refs):
                ctx = acc[...] * inv_l                              # (C_l, 1)
                y = y + jnp.sum(ctx * w1t[...], axis=0, keepdims=True)

            # LayerNorm([planes, 1, 1]) over the channel axis, eps = 1e-5.
            mu = jnp.mean(y, axis=-1, keepdims=True)
            var = jnp.mean((y - mu) * (y - mu), axis=-1, keepdims=True)
            y = (y - mu) * lax.rsqrt(var + LN_EPS)
            y = y * g_ref[...] + beta_ref[...]

            y = jnp.maximum(y, 0.0)                                 # ReLU

            # conv2 (1x1, planes -> Cout): out[o] = sum_p W2[o, p] * y[p] + b2[o]
            out = jnp.sum(w2_ref[...] * y, axis=-1, keepdims=True) + b2_ref[...]
            o_ref[...] = out.astype(o_ref.dtype)                    # (Cout, 1)

    return kernel


def _pick_hw_tile(hw, c_total, itemsize):
    """Largest lane-dense pixel tile whose double-buffered x slab fits the budget."""
    lanes_budget = _X_VMEM_BUDGET // max(2 * c_total * itemsize, 1)
    tile = min(_MAX_HW_TILE, max(128, (lanes_budget // 128) * 128))
    if hw <= tile:
        return hw          # full-HW block: always a legal block shape
    return tile            # multiple of 128; tail tile handled by in-kernel masking


def context_weight_block(xs, params, *, hw_tile=None):
    """ContextWeightBlcok forward (pooling_type='att', weight_type=False).

    xs: list of (B, C_l, H, W) arrays, one per pyramid level (same H, W).  The
    module's torch.cat(x, dim=1) is never materialized in HBM: each level
    streams directly from HBM in its native dtype (fp32 or bf16) and per-level
    partial logits / contexts are combined inside the kernel.
    Returns (B, sum(C_l) // levels, 1, 1), matching the PyTorch module.
    """
    num_levels = len(xs)
    B, _, H, W = xs[0].shape
    HW = H * W
    c_sizes = [int(x.shape[1]) for x in xs]
    C = sum(c_sizes)
    offsets = [0]
    for c in c_sizes:
        offsets.append(offsets[-1] + c)

    # Parameters in torch layout; cast once (tiny arrays).
    w1 = params["w1"].astype(jnp.float32)               # (planes, C)
    w2 = params["w2"].astype(jnp.float32)               # (Cout, planes)
    planes, cout = int(w1.shape[0]), int(w2.shape[0])
    wm = params["conv_mask_w"].reshape(C).astype(jnp.float32)
    bm = params["conv_mask_b"].reshape(1, 1).astype(jnp.float32)
    b1 = params["b1"].reshape(1, planes).astype(jnp.float32)
    gamma = params["ln_gamma"].reshape(1, planes).astype(jnp.float32)
    beta = params["ln_beta"].reshape(1, planes).astype(jnp.float32)
    b2 = params["b2"].reshape(cout, 1).astype(jnp.float32)

    # Split concatenated-channel weights per level (tiny, negligible work).
    wm_cols = [wm[o:o + c].reshape(c, 1) for o, c in zip(offsets[:-1], c_sizes)]
    w1ts = [jnp.transpose(w1[:, o:o + c]) for o, c in zip(offsets[:-1], c_sizes)]

    # Flattened-pixel views in the native dtype (no concat, no up-cast copies).
    x_flats = [x.reshape(B, c, HW) for x, c in zip(xs, c_sizes)]

    itemsize = jnp.dtype(xs[0].dtype).itemsize
    if hw_tile is None:
        hw_tile = _pick_hw_tile(HW, C, itemsize)
    assert hw_tile == HW or hw_tile % 128 == 0, (
        "hw_tile must equal H*W or be a multiple of 128")
    num_hw_tiles = pl.cdiv(HW, hw_tile)

    x_map = lambda b, t: (b, 0, t)
    const2 = lambda b, t: (0, 0)
    out_map = lambda b, t: (b, 0, 0)

    in_specs = (
        [pl.BlockSpec((pl.Squeezed(), c, hw_tile), x_map) for c in c_sizes]
        + [pl.BlockSpec((c, 1), const2) for c in c_sizes]           # conv_mask w
        + [pl.BlockSpec((c, planes), const2) for c in c_sizes]      # conv1 w (C_l, planes)
        + [pl.BlockSpec((1, 1), const2),                            # conv_mask b
           pl.BlockSpec((1, planes), const2),                       # conv1 b
           pl.BlockSpec((1, planes), const2),                       # LN gamma
           pl.BlockSpec((1, planes), const2),                       # LN beta
           pl.BlockSpec((cout, planes), const2),                    # conv2 w
           pl.BlockSpec((cout, 1), const2)])                        # conv2 b

    out = pl.pallas_call(
        _build_kernel(num_levels, HW, hw_tile, num_hw_tiles),
        out_shape=jax.ShapeDtypeStruct((B, cout, 1), xs[0].dtype),
        grid_spec=pltpu.PrefetchScalarGridSpec(
            num_scalar_prefetch=0,
            grid=(B, num_hw_tiles),
            in_specs=in_specs,
            out_specs=pl.BlockSpec((pl.Squeezed(), cout, 1), out_map),
            scratch_shapes=(
                [pltpu.VMEM((1, 1), jnp.float32),                   # running max
                 pltpu.VMEM((1, 1), jnp.float32)]                   # running denom
                + [pltpu.VMEM((c, 1), jnp.float32) for c in c_sizes])),  # context acc
        compiler_params=pltpu.CompilerParams(
            dimension_semantics=("parallel", "arbitrary"),
            vmem_limit_bytes=32 * 1024 * 1024),
    )(*x_flats, *wm_cols, *w1ts, bm, b1, gamma, beta, w2, b2)

    return out.reshape(B, cout, 1, 1)                # matches PyTorch (B, C//levels, 1, 1)


def reference_forward(xs, params):
    """Pure-JAX reference mirroring the PyTorch forward (exact f32 elementwise math)."""
    x = jnp.concatenate([x.astype(jnp.float32) for x in xs], axis=1)
    B, C, H, W = x.shape
    xf = x.reshape(B, C, H * W)
    logits = jnp.sum(xf * params["conv_mask_w"].reshape(1, C, 1), axis=1)
    logits = logits + params["conv_mask_b"].reshape(1, 1)            # (B, HW)
    p = jax.nn.softmax(logits, axis=-1)                              # (B, HW)
    context = jnp.sum(xf * p[:, None, :], axis=-1)                   # (B, C)
    w1 = params["w1"]                                                # (planes, C)
    y = jnp.sum(context[:, None, :] * w1[None], axis=-1) + params["b1"][None]
    mu = jnp.mean(y, axis=-1, keepdims=True)
    var = jnp.mean((y - mu) ** 2, axis=-1, keepdims=True)
    y = (y - mu) / jnp.sqrt(var + LN_EPS)
    y = y * params["ln_gamma"][None] + params["ln_beta"][None]
    y = jnp.maximum(y, 0.0)
    w2 = params["w2"]                                                # (Cout, planes)
    out = jnp.sum(y[:, None, :] * w2[None], axis=-1) + params["b2"][None]
    return out.reshape(B, -1, 1, 1)


def make_params(key, inplanes, levels, ratio=0.25):
    planes = int(inplanes * ratio)
    cout = inplanes // levels
    ks = jax.random.split(key, 6)
    # NOTE: reset_parameters() zero-inits the last conv; we use small random
    # values instead so the kernel exercises a non-trivial numeric path.
    return {
        "conv_mask_w": jax.random.normal(ks[0], (1, inplanes), jnp.float32) * 0.1,
        "conv_mask_b": jax.random.normal(ks[1], (1,), jnp.float32) * 0.1,
        "w1": jax.random.normal(ks[2], (planes, inplanes), jnp.float32) * 0.1,
        "b1": jax.random.normal(ks[3], (planes,), jnp.float32) * 0.1,
        "ln_gamma": jnp.ones((planes,), jnp.float32),
        "ln_beta": jnp.zeros((planes,), jnp.float32),
        "w2": jax.random.normal(ks[4], (cout, planes), jnp.float32) * 0.1,
        "b2": jax.random.normal(ks[5], (cout,), jnp.float32) * 0.1,
    }


if __name__ == "__main__":
    key = jax.random.PRNGKey(0)

    # --- case 1: 2 levels, 16x16 maps, single full-HW tile -------------------
    B, levels, per_level_c, H, W = 2, 2, 8, 16, 16
    inplanes = levels * per_level_c                     # channels after (virtual) cat
    k1, k2, kp, key = jax.random.split(key, 4)
    xs = [jax.random.normal(k1, (B, per_level_c, H, W), jnp.float32),
          jax.random.normal(k2, (B, per_level_c, H, W), jnp.float32)]
    params = make_params(kp, inplanes, levels)

    out = jax.block_until_ready(context_weight_block(xs, params))
    ref = reference_forward(xs, params)
    assert out.shape == (B, inplanes // levels, 1, 1), out.shape
    assert jnp.allclose(out, ref, atol=1e-4, rtol=1e-4), (out, ref)

    # --- case 2: 3 levels, 20x20 maps, forced 128-lane tiles (masked tail) ---
    B2, levels2, per_level_c2, H2, W2 = 2, 3, 8, 20, 20
    inplanes2 = levels2 * per_level_c2
    ka, kb, kc, kp2 = jax.random.split(key, 4)
    xs2 = [jax.random.normal(k, (B2, per_level_c2, H2, W2), jnp.float32)
           for k in (ka, kb, kc)]
    params2 = make_params(kp2, inplanes2, levels2)

    out2 = jax.block_until_ready(context_weight_block(xs2, params2, hw_tile=128))
    ref2 = reference_forward(xs2, params2)
    assert out2.shape == (B2, inplanes2 // levels2, 1, 1), out2.shape
    assert jnp.allclose(out2, ref2, atol=1e-4, rtol=1e-4), (out2, ref2)

    print("KERNEL_OK")
</pallas_src>

<mosaic_0001>
module attributes {stable_mosaic.version = 11 : i64} {
  func.func @kernel(%arg0: i32, %arg1: i32, %arg2: memref<1x8x256xf32, #tpu.memory_space<vmem>>, %arg3: memref<1x8x256xf32, #tpu.memory_space<vmem>>, %arg4: memref<8x1xf32, #tpu.memory_space<vmem>>, %arg5: memref<8x1xf32, #tpu.memory_space<vmem>>, %arg6: memref<8x4xf32, #tpu.memory_space<vmem>>, %arg7: memref<8x4xf32, #tpu.memory_space<vmem>>, %arg8: memref<1x1xf32, #tpu.memory_space<vmem>>, %arg9: memref<1x4xf32, #tpu.memory_space<vmem>>, %arg10: memref<1x4xf32, #tpu.memory_space<vmem>>, %arg11: memref<1x4xf32, #tpu.memory_space<vmem>>, %arg12: memref<8x4xf32, #tpu.memory_space<vmem>>, %arg13: memref<8x1xf32, #tpu.memory_space<vmem>>, %arg14: memref<1x8x1xf32, #tpu.memory_space<vmem>>, %arg15: memref<1x1xf32, #tpu.memory_space<vmem>>, %arg16: memref<1x1xf32, #tpu.memory_space<vmem>>, %arg17: memref<8x1xf32, #tpu.memory_space<vmem>>, %arg18: memref<8x1xf32, #tpu.memory_space<vmem>>) attributes {dimension_semantics = [#tpu.dimension_semantics<parallel>, #tpu.dimension_semantics<arbitrary>], iteration_bounds = array<i64: 2, 1>, scalar_prefetch = 0 : i64, scratch_operands = 4 : i64, tpu.core_type = #tpu.core_type<tc>, window_params = [{transform_indices = @transform_0, window_bounds = array<i64: 1, 8, 256>}, {transform_indices = @transform_1, window_bounds = array<i64: 1, 8, 256>}, {pipeline_mode = #tpu.pipeline_mode<synchronous>, transform_indices = @transform_2, window_bounds = array<i64: 8, 1>}, {pipeline_mode = #tpu.pipeline_mode<synchronous>, transform_indices = @transform_3, window_bounds = array<i64: 8, 1>}, {pipeline_mode = #tpu.pipeline_mode<synchronous>, transform_indices = @transform_4, window_bounds = array<i64: 8, 4>}, {pipeline_mode = #tpu.pipeline_mode<synchronous>, transform_indices = @transform_5, window_bounds = array<i64: 8, 4>}, {pipeline_mode = #tpu.pipeline_mode<synchronous>, transform_indices = @transform_6, window_bounds = array<i64: 1, 1>}, {pipeline_mode = #tpu.pipeline_mode<synchronous>, transform_indices = @transform_7, window_bounds = array<i64: 1, 4>}, {pipeline_mode = #tpu.pipeline_mode<synchronous>, transform_indices = @transform_8, window_bounds = array<i64: 1, 4>}, {pipeline_mode = #tpu.pipeline_mode<synchronous>, transform_indices = @transform_9, window_bounds = array<i64: 1, 4>}, {pipeline_mode = #tpu.pipeline_mode<synchronous>, transform_indices = @transform_10, window_bounds = array<i64: 8, 4>}, {pipeline_mode = #tpu.pipeline_mode<synchronous>, transform_indices = @transform_11, window_bounds = array<i64: 8, 1>}, {transform_indices = @transform_12, window_bounds = array<i64: 1, 8, 1>}]} {
    %c0_i32 = arith.constant 0 : i32
    %0 = arith.cmpi eq, %arg1, %c0_i32 : i32
    %1 = arith.extui %0 : i1 to i32
    %c0_i32_0 = arith.constant 0 : i32
    %2 = arith.cmpi ne, %1, %c0_i32_0 : i32
    scf.if %2 {
      %cst_35 = arith.constant 0xFF800000 : f32
      %58 = vector.broadcast %cst_35 : f32 to vector<1x1xf32>
      %c0_36 = arith.constant 0 : index
      %c0_37 = arith.constant 0 : index
      %59 = vector.load %arg15[%c0_36, %c0_37] : memref<1x1xf32, #tpu.memory_space<vmem>>, vector<1x1xf32>
      tpu.vector_store %arg15[%c0_36, %c0_37], %58 {strides = array<i32>} : memref<1x1xf32, #tpu.memory_space<vmem>>, vector<1x1xf32>,
      %cst_38 = arith.constant 0.000000e+00 : f32
      %60 = vector.broadcast %cst_38 : f32 to vector<1x1xf32>
      %c0_39 = arith.constant 0 : index
      %c0_40 = arith.constant 0 : index
      %61 = vector.load %arg16[%c0_39, %c0_40] : memref<1x1xf32, #tpu.memory_space<vmem>>, vector<1x1xf32>
      tpu.vector_store %arg16[%c0_39, %c0_40], %60 {strides = array<i32>} : memref<1x1xf32, #tpu.memory_space<vmem>>, vector<1x1xf32>,
      %cst_41 = arith.constant 0.000000e+00 : f32
      %62 = vector.broadcast %cst_41 : f32 to vector<8x1xf32>
      %c0_42 = arith.constant 0 : index
      %c0_43 = arith.constant 0 : index
      %63 = vector.load %arg17[%c0_42, %c0_43] : memref<8x1xf32, #tpu.memory_space<vmem>>, vector<8x1xf32>
      tpu.vector_store %arg17[%c0_42, %c0_43], %62 {strides = array<i32>} : memref<8x1xf32, #tpu.memory_space<vmem>>, vector<8x1xf32>,
      %cst_44 = arith.constant 0.000000e+00 : f32
      %64 = vector.broadcast %cst_44 : f32 to vector<8x1xf32>
      %c0_45 = arith.constant 0 : index
      %c0_46 = arith.constant 0 : index
      %65 = vector.load %arg18[%c0_45, %c0_46] : memref<8x1xf32, #tpu.memory_space<vmem>>, vector<8x1xf32>
      tpu.vector_store %arg18[%c0_45, %c0_46], %64 {strides = array<i32>} : memref<8x1xf32, #tpu.memory_space<vmem>>, vector<8x1xf32>,
    } else {
    }
    %c0 = arith.constant 0 : index
    %c0_1 = arith.constant 0 : index
    %c0_2 = arith.constant 0 : index
    %3 = vector.load %arg2[%c0, %c0_1, %c0_2] : memref<1x8x256xf32, #tpu.memory_space<vmem>>, vector<1x8x256xf32>
    %4 = vector.shape_cast %3 : vector<1x8x256xf32> to vector<8x256xf32>
    %c0_3 = arith.constant 0 : index
    %c0_4 = arith.constant 0 : index
    %c0_5 = arith.constant 0 : index
    %5 = vector.load %arg3[%c0_3, %c0_4, %c0_5] : memref<1x8x256xf32, #tpu.memory_space<vmem>>, vector<1x8x256xf32>
    %6 = vector.shape_cast %5 : vector<1x8x256xf32> to vector<8x256xf32>
    %c0_6 = arith.constant 0 : index
    %c0_7 = arith.constant 0 : index
    %7 = vector.load %arg4[%c0_6, %c0_7] : memref<8x1xf32, #tpu.memory_space<vmem>>, vector<8x1xf32>
    %8 = vector.broadcast %7 : vector<8x1xf32> to vector<8x256xf32>
    %9 = arith.mulf %4, %8 : vector<8x256xf32>
    %cst = arith.constant dense<0.000000e+00> : vector<256xf32>
    %10 = vector.multi_reduction <add>, %9, %cst [0] : vector<8x256xf32> to vector<256xf32>
    %11 = vector.shape_cast %10 : vector<256xf32> to vector<1x256xf32>
    %c0_8 = arith.constant 0 : index
    %c0_9 = arith.constant 0 : index
    %12 = vector.load %arg5[%c0_8, %c0_9] : memref<8x1xf32, #tpu.memory_space<vmem>>, vector<8x1xf32>
    %13 = vector.broadcast %12 : vector<8x1xf32> to vector<8x256xf32>
    %14 = arith.mulf %6, %13 : vector<8x256xf32>
    %cst_10 = arith.constant dense<0.000000e+00> : vector<256xf32>
    %15 = vector.multi_reduction <add>, %14, %cst_10 [0] : vector<8x256xf32> to vector<256xf32>
    %16 = vector.shape_cast %15 : vector<256xf32> to vector<1x256xf32>
    %17 = arith.addf %11, %16 : vector<1x256xf32>
    %c0_11 = arith.constant 0 : index
    %c0_12 = arith.constant 0 : index
    %18 = vector.load %arg8[%c0_11, %c0_12] : memref<1x1xf32, #tpu.memory_space<vmem>>, vector<1x1xf32>
    %19 = vector.broadcast %18 : vector<1x1xf32> to vector<1x256xf32>
    %20 = arith.addf %17, %19 : vector<1x256xf32>
    %c0_13 = arith.constant 0 : index
    %c0_14 = arith.constant 0 : index
    %21 = vector.load %arg15[%c0_13, %c0_14] : memref<1x1xf32, #tpu.memory_space<vmem>>, vector<1x1xf32>
    %cst_15 = arith.constant dense<0xFF800000> : vector<1xf32>
    %22 = vector.multi_reduction <maximumf>, %20, %cst_15 [1] : vector<1x256xf32> to vector<1xf32>
    %23 = vector.shape_cast %22 : vector<1xf32> to vector<1x1xf32>
    %24 = arith.maximumf %21, %23 : vector<1x1xf32>
    %25 = arith.subf %21, %24 : vector<1x1xf32>
    %26 = math.exp %25 : vector<1x1xf32>
    %27 = vector.broadcast %24 : vector<1x1xf32> to vector<1x256xf32>
    %28 = arith.subf %20, %27 : vector<1x256xf32>
    %29 = math.exp %28 : vector<1x256xf32>
    %c0_16 = arith.constant 0 : index
    %c0_17 = arith.constant 0 : index
    %30 = vector.load %arg16[%c0_16, %c0_17] : memref<1x1xf32, #tpu.memory_space<vmem>>, vector<1x1xf32>
    %31 = arith.mulf %26, %30 : vector<1x1xf32>
    %cst_18 = arith.constant dense<0.000000e+00> : vector<1xf32>
    %32 = vector.multi_reduction <add>, %29, %cst_18 [1] : vector<1x256xf32> to vector<1xf32>
    %33 = vector.shape_cast %32 : vector<1xf32> to vector<1x1xf32>
    %34 = arith.addf %31, %33 : vector<1x1xf32>
    %c0_19 = arith.constant 0 : index
    %c0_20 = arith.constant 0 : index
    %35 = vector.load %arg16[%c0_19, %c0_20] : memref<1x1xf32, #tpu.memory_space<vmem>>, vector<1x1xf32>
    tpu.vector_store %arg16[%c0_19, %c0_20], %34 {strides = array<i32>} : memref<1x1xf32, #tpu.memory_space<vmem>>, vector<1x1xf32>,
    %c0_21 = arith.constant 0 : index
    %c0_22 = arith.constant 0 : index
    %36 = vector.load %arg15[%c0_21, %c0_22] : memref<1x1xf32, #tpu.memory_space<vmem>>, vector<1x1xf32>
    tpu.vector_store %arg15[%c0_21, %c0_22], %24 {strides = array<i32>} : memref<1x1xf32, #tpu.memory_space<vmem>>, vector<1x1xf32>,
    %37 = vector.broadcast %29 : vector<1x256xf32> to vector<8x256xf32>
    %38 = arith.mulf %4, %37 : vector<8x256xf32>
    %c0_23 = arith.constant 0 : index
    %c0_24 = arith.constant 0 : index
    %39 = vector.load %arg17[%c0_23, %c0_24] : memref<8x1xf32, #tpu.memory_space<vmem>>, vector<8x1xf32>
    %40 = vector.broadcast %26 : vector<1x1xf32> to vector<8x1xf32>
    %41 = arith.mulf %40, %39 : vector<8x1xf32>
    %cst_25 = arith.constant dense<0.000000e+00> : vector<8xf32>
    %42 = vector.multi_reduction <add>, %38, %cst_25 [1] : vector<8x256xf32> to vector<8xf32>
    %43 = vector.shape_cast %42 : vector<8xf32> to vector<8x1xf32>
    %44 = arith.addf %41, %43 : vector<8x1xf32>
    %c0_26 = arith.constant 0 : index
    %c0_27 = arith.constant 0 : index
    %45 = vector.load %arg17[%c0_26, %c0_27] : memref<8x1xf32, #tpu.memory_space<vmem>>, vector<8x1xf32>
    tpu.vector_store %arg17[%c0_26, %c0_27], %44 {strides = array<i32>} : memref<8x1xf32, #tpu.memory_space<vmem>>, vector<8x1xf32>,
    %46 = vector.broadcast %29 : vector<1x256xf32> to vector<8x256xf32>
    %47 = arith.mulf %6, %46 : vector<8x256xf32>
    %c0_28 = arith.constant 0 : index
    %c0_29 = arith.constant 0 : index
    %48 = vector.load %arg18[%c0_28, %c0_29] : memref<8x1xf32, #tpu.memory_space<vmem>>, vector<8x1xf32>
    %49 = vector.broadcast %26 : vector<1x1xf32> to vector<8x1xf32>
    %50 = arith.mulf %49, %48 : vector<8x1xf32>
    %cst_30 = arith.constant dense<0.000000e+00> : vector<8xf32>
    %51 = vector.multi_reduction <add>, %47, %cst_30 [1] : vector<8x256xf32> to vector<8xf32>
    %52 = vector.shape_cast %51 : vector<8xf32> to vector<8x1xf32>
    %53 = arith.addf %50, %52 : vector<8x1xf32>
    %c0_31 = arith.constant 0 : index
    %c0_32 = arith.constant 0 : index
    %54 = vector.load %arg18[%c0_31, %c0_32] : memref<8x1xf32, #tpu.memory_space<vmem>>, vector<8x1xf32>
    tpu.vector_store %arg18[%c0_31, %c0_32], %53 {strides = array<i32>} : memref<8x1xf32, #tpu.memory_space<vmem>>, vector<8x1xf32>,
    %c0_i32_33 = arith.constant 0 : i32
    %55 = arith.cmpi eq, %arg1, %c0_i32_33 : i32
    %56 = arith.extui %55 : i1 to i32
    %c0_i32_34 = arith.constant 0 : i32
    %57 = arith.cmpi ne, %56, %c0_i32_34 : i32
    scf.if %57 {
      %c0_35 = arith.constant 0 : index
      %c0_36 = arith.constant 0 : index
      %58 = vector.load %arg16[%c0_35, %c0_36] : memref<1x1xf32, #tpu.memory_space<vmem>>, vector<1x1xf32>
      %59 = tpu.reciprocal %58 : vector<1x1xf32> -> vector<1x1xf32>
      %c0_37 = arith.constant 0 : index
      %c0_38 = arith.constant 0 : index
      %60 = vector.load %arg9[%c0_37, %c0_38] : memref<1x4xf32, #tpu.memory_space<vmem>>, vector<1x4xf32>
      %c0_39 = arith.constant 0 : index
      %c0_40 = arith.constant 0 : index
      %61 = vector.load %arg17[%c0_39, %c0_40] : memref<8x1xf32, #tpu.memory_space<vmem>>, vector<8x1xf32>
      %62 = vector.broadcast %59 : vector<1x1xf32> to vector<8x1xf32>
      %63 = arith.mulf %61, %62 : vector<8x1xf32>
      %c0_41 = arith.constant 0 : index
      %c0_42 = arith.constant 0 : index
      %64 = vector.load %arg6[%c0_41, %c0_42] : memref<8x4xf32, #tpu.memory_space<vmem>>, vector<8x4xf32>
      %65 = vector.broadcast %63 : vector<8x1xf32> to vector<8x4xf32>
      %66 = arith.mulf %65, %64 : vector<8x4xf32>
      %cst_43 = arith.constant dense<0.000000e+00> : vector<4xf32>
      %67 = vector.multi_reduction <add>, %66, %cst_43 [0] : vector<8x4xf32> to vector<4xf32>
      %68 = vector.shape_cast %67 : vector<4xf32> to vector<1x4xf32>
      %69 = arith.addf %60, %68 : vector<1x4xf32>
      %c0_44 = arith.constant 0 : index
      %c0_45 = arith.constant 0 : index
      %70 = vector.load %arg18[%c0_44, %c0_45] : memref<8x1xf32, #tpu.memory_space<vmem>>, vector<8x1xf32>
      %71 = vector.broadcast %59 : vector<1x1xf32> to vector<8x1xf32>
      %72 = arith.mulf %70, %71 : vector<8x1xf32>
      %c0_46 = arith.constant 0 : index
      %c0_47 = arith.constant 0 : index
      %73 = vector.load %arg7[%c0_46, %c0_47] : memref<8x4xf32, #tpu.memory_space<vmem>>, vector<8x4xf32>
      %74 = vector.broadcast %72 : vector<8x1xf32> to vector<8x4xf32>
      %75 = arith.mulf %74, %73 : vector<8x4xf32>
      %cst_48 = arith.constant dense<0.000000e+00> : vector<4xf32>
      %76 = vector.multi_reduction <add>, %75, %cst_48 [0] : vector<8x4xf32> to vector<4xf32>
      %77 = vector.shape_cast %76 : vector<4xf32> to vector<1x4xf32>
      %78 = arith.addf %69, %77 : vector<1x4xf32>
      %cst_49 = arith.constant dense<0.000000e+00> : vector<1xf32>
      %79 = vector.multi_reduction <add>, %78, %cst_49 [1] : vector<1x4xf32> to vector<1xf32>
      %80 = vector.shape_cast %79 : vector<1xf32> to vector<1x1xf32>
      %cst_50 = arith.constant 4.000000e+00 : f32
      %81 = vector.broadcast %cst_50 : f32 to vector<1x1xf32>
      %82 = arith.divf %80, %81 : vector<1x1xf32>
      %83 = vector.broadcast %82 : vector<1x1xf32> to vector<1x4xf32>
      %84 = arith.subf %78, %83 : vector<1x4xf32>
      %85 = vector.broadcast %82 : vector<1x1xf32> to vector<1x4xf32>
      %86 = arith.subf %78, %85 : vector<1x4xf32>
      %87 = arith.mulf %84, %86 : vector<1x4xf32>
      %cst_51 = arith.constant dense<0.000000e+00> : vector<1xf32>
      %88 = vector.multi_reduction <add>, %87, %cst_51 [1] : vector<1x4xf32> to vector<1xf32>
      %89 = vector.shape_cast %88 : vector<1xf32> to vector<1x1xf32>
      %cst_52 = arith.constant 4.000000e+00 : f32
      %90 = vector.broadcast %cst_52 : f32 to vector<1x1xf32>
      %91 = arith.divf %89, %90 : vector<1x1xf32>
      %92 = vector.broadcast %82 : vector<1x1xf32> to vector<1x4xf32>
      %93 = arith.subf %78, %92 : vector<1x4xf32>
      %cst_53 = arith.constant 9.99999974E-6 : f32
      %94 = vector.broadcast %cst_53 : f32 to vector<1x1xf32>
      %95 = arith.addf %91, %94 : vector<1x1xf32>
      %96 = math.rsqrt %95 : vector<1x1xf32>
      %97 = vector.broadcast %96 : vector<1x1xf32> to vector<1x4xf32>
      %98 = arith.mulf %93, %97 : vector<1x4xf32>
      %c0_54 = arith.constant 0 : index
      %c0_55 = arith.constant 0 : index
      %99 = vector.load %arg10[%c0_54, %c0_55] : memref<1x4xf32, #tpu.memory_space<vmem>>, vector<1x4xf32>
      %100 = arith.mulf %98, %99 : vector<1x4xf32>
      %c0_56 = arith.constant 0 : index
      %c0_57 = arith.constant 0 : index
      %101 = vector.load %arg11[%c0_56, %c0_57] : memref<1x4xf32, #tpu.memory_space<vmem>>, vector<1x4xf32>
      %102 = arith.addf %100, %101 : vector<1x4xf32>
      %cst_58 = arith.constant 0.000000e+00 : f32
      %103 = vector.broadcast %cst_58 : f32 to vector<1x4xf32>
      %104 = arith.maximumf %102, %103 : vector<1x4xf32>
      %c0_59 = arith.constant 0 : index
      %c0_60 = arith.constant 0 : index
      %105 = vector.load %arg12[%c0_59, %c0_60] : memref<8x4xf32, #tpu.memory_space<vmem>>, vector<8x4xf32>
      %106 = vector.broadcast %104 : vector<1x4xf32> to vector<8x4xf32>
      %107 = arith.mulf %105, %106 : vector<8x4xf32>
      %cst_61 = arith.constant dense<0.000000e+00> : vector<8xf32>
      %108 = vector.multi_reduction <add>, %107, %cst_61 [1] : vector<8x4xf32> to vector<8xf32>
      %109 = vector.shape_cast %108 : vector<8xf32> to vector<8x1xf32>
      %c0_62 = arith.constant 0 : index
      %c0_63 = arith.constant 0 : index
      %110 = vector.load %arg13[%c0_62, %c0_63] : memref<8x1xf32, #tpu.memory_space<vmem>>, vector<8x1xf32>
      %111 = arith.addf %109, %110 : vector<8x1xf32>
      %c0_64 = arith.constant 0 : index
      %c0_65 = arith.constant 0 : index
      %c0_66 = arith.constant 0 : index
      %112 = vector.load %arg14[%c0_64, %c0_65, %c0_66] : memref<1x8x1xf32, #tpu.memory_space<vmem>>, vector<1x8x1xf32>
      %113 = vector.shape_cast %112 : vector<1x8x1xf32> to vector<8x1xf32>
      %114 = vector.shape_cast %111 : vector<8x1xf32> to vector<1x8x1xf32>
      tpu.vector_store %arg14[%c0_64, %c0_65, %c0_66], %114 {strides = array<i32>} : memref<1x8x1xf32, #tpu.memory_space<vmem>>, vector<1x8x1xf32>,
    } else {
    }
    return
  }
  func.func @transform_0(%arg0: i32, %arg1: i32) -> (i32, i32, i32) {
    %c0_i32 = arith.constant 0 : i32
    %c0_i32_0 = arith.constant 0 : i32
    return %arg0, %c0_i32, %arg1 : i32, i32, i32
  }
  func.func @transform_1(%arg0: i32, %arg1: i32) -> (i32, i32, i32) {
    %c0_i32 = arith.constant 0 : i32
    %c0_i32_0 = arith.constant 0 : i32
    return %arg0, %c0_i32, %arg1 : i32, i32, i32
  }
  func.func @transform_2(%arg0: i32, %arg1: i32) -> (i32, i32) {
    %c0_i32 = arith.constant 0 : i32
    %c0_i32_0 = arith.constant 0 : i32
    %c0_i32_1 = arith.constant 0 : i32
    return %c0_i32, %c0_i32_0 : i32, i32
  }
  func.func @transform_3(%arg0: i32, %arg1: i32) -> (i32, i32) {
    %c0_i32 = arith.constant 0 : i32
    %c0_i32_0 = arith.constant 0 : i32
    %c0_i32_1 = arith.constant 0 : i32
    return %c0_i32, %c0_i32_0 : i32, i32
  }
  func.func @transform_4(%arg0: i32, %arg1: i32) -> (i32, i32) {
    %c0_i32 = arith.constant 0 : i32
    %c0_i32_0 = arith.constant 0 : i32
    %c0_i32_1 = arith.constant 0 : i32
    return %c0_i32, %c0_i32_0 : i32, i32
  }
  func.func @transform_5(%arg0: i32, %arg1: i32) -> (i32, i32) {
    %c0_i32 = arith.constant 0 : i32
    %c0_i32_0 = arith.constant 0 : i32
    %c0_i32_1 = arith.constant 0 : i32
    return %c0_i32, %c0_i32_0 : i32, i32
  }
  func.func @transform_6(%arg0: i32, %arg1: i32) -> (i32, i32) {
    %c0_i32 = arith.constant 0 : i32
    %c0_i32_0 = arith.constant 0 : i32
    %c0_i32_1 = arith.constant 0 : i32
    return %c0_i32, %c0_i32_0 : i32, i32
  }
  func.func @transform_7(%arg0: i32, %arg1: i32) -> (i32, i32) {
    %c0_i32 = arith.constant 0 : i32
    %c0_i32_0 = arith.constant 0 : i32
    %c0_i32_1 = arith.constant 0 : i32
    return %c0_i32, %c0_i32_0 : i32, i32
  }
  func.func @transform_8(%arg0: i32, %arg1: i32) -> (i32, i32) {
    %c0_i32 = arith.constant 0 : i32
    %c0_i32_0 = arith.constant 0 : i32
    %c0_i32_1 = arith.constant 0 : i32
    return %c0_i32, %c0_i32_0 : i32, i32
  }
  func.func @transform_9(%arg0: i32, %arg1: i32) -> (i32, i32) {
    %c0_i32 = arith.constant 0 : i32
    %c0_i32_0 = arith.constant 0 : i32
    %c0_i32_1 = arith.constant 0 : i32
    return %c0_i32, %c0_i32_0 : i32, i32
  }
  func.func @transform_10(%arg0: i32, %arg1: i32) -> (i32, i32) {
    %c0_i32 = arith.constant 0 : i32
    %c0_i32_0 = arith.constant 0 : i32
    %c0_i32_1 = arith.constant 0 : i32
    return %c0_i32, %c0_i32_0 : i32, i32
  }
  func.func @transform_11(%arg0: i32, %arg1: i32) -> (i32, i32) {
    %c0_i32 = arith.constant 0 : i32
    %c0_i32_0 = arith.constant 0 : i32
    %c0_i32_1 = arith.constant 0 : i32
    return %c0_i32, %c0_i32_0 : i32, i32
  }
  func.func @transform_12(%arg0: i32, %arg1: i32) -> (i32, i32, i32) {
    %c0_i32 = arith.constant 0 : i32
    %c0_i32_0 = arith.constant 0 : i32
    %c0_i32_1 = arith.constant 0 : i32
    return %arg0, %c0_i32, %c0_i32_0 : i32, i32, i32
  }
}

</mosaic_0001>

<llo_original>
// kernel: tpu_custom_call.1
$region0: #{tpu_custom_call.1}
  #allocation0 [shape = 'u32[]', space=smem, size = 0x4, offset = 0x4, fixed_abs, tag = 'smem constant byte address 0x4 - core index']
  #allocation1 [shape = 'u32[72,128]{1,0:T(1,128)}', space=vmem, size = 0x9000, scoped, tag = 'internal scratch']
  #allocation2 [shape = 'f32[1,1]{1,0:T(1,128)}', space=vmem, size = 0x200, scoped, tag = 'scratch operand']
  #allocation3 [shape = 'f32[1,1]{1,0:T(1,128)}', space=vmem, size = 0x200, scoped, tag = 'scratch operand']
  #allocation4 [shape = 'f32[8,1]{1,0:T(8,128)}', space=vmem, size = 0x1000, scoped, tag = 'scratch operand']
  #allocation5 [shape = 'f32[8,1]{1,0:T(8,128)}', space=vmem, size = 0x1000, scoped, tag = 'scratch operand']
  #allocation6 [shape = 'f32[1,1]{1,0:T(1,128)S(1)}', space=vmem, size = 0x200, scoped, tag = 'scoped memory for tpu_custom_call.1']
  %s0 = inlined_call_operand.hbm [shape: f32[2,8,256], index: 0, kind: input, shape index: {}]
  %s1 = inlined_call_operand.hbm [shape: f32[2,8,256], index: 1, kind: input, shape index: {}]
  %s2 = inlined_call_operand.vmem [shape: f32[8,1], index: 2, kind: input, shape index: {}]
  %s3 = inlined_call_operand.vmem [shape: f32[8,1], index: 3, kind: input, shape index: {}]
  %s4 = inlined_call_operand.vmem [shape: f32[8,4], index: 4, kind: input, shape index: {}]
  %s5 = inlined_call_operand.vmem [shape: f32[8,4], index: 5, kind: input, shape index: {}]
  %s6 = inlined_call_operand.<no memory space> [shape: f32[1,1], index: 6, kind: input, shape index: {}]
  %s7 = inlined_call_operand.vmem [shape: f32[1,4], index: 7, kind: input, shape index: {}]
  %s8 = inlined_call_operand.vmem [shape: f32[1,4], index: 8, kind: input, shape index: {}]
  %s9 = inlined_call_operand.vmem [shape: f32[1,4], index: 9, kind: input, shape index: {}]
  %s10 = inlined_call_operand.vmem [shape: f32[8,4], index: 10, kind: input, shape index: {}]
  %s11 = inlined_call_operand.vmem [shape: f32[8,1], index: 11, kind: input, shape index: {}]
  %s12 = inlined_call_operand.vmem [shape: f32[2,8,1], index: 12, kind: output, shape index: {}]
  %s13 = sld [smem:[#allocation0]]
  $region97: #{tpu_custom_call.1} parent=0
    _
  %s15 = ssub.s32 1, %s13
  %s16 = scalar_select 0, %s15, %s13
  %v17 = vstv %s6
  %18 = vst [vmem:[#allocation6] sm:$0x1] %v17
  $region1: #{tpu_custom_call.1} parent=0
    #allocation7 [shape = 'u8[16384]{0}', space=vmem, size = 0x4000, scoped, tag = 'input window, operand 0']
    #allocation8 [shape = 's32[2]{0}', space=sflag, size = 0x8, scoped, tag = 'scoped memory for tpu_custom_call.1']
    #allocation9 [shape = 'u8[16384]{0}', space=vmem, size = 0x4000, scoped, tag = 'input window, operand 1']
    #allocation10 [shape = 's32[2]{0}', space=sflag, size = 0x8, scoped, tag = 'scoped memory for tpu_custom_call.1']
    %19 = vsyncpa [#allocation8], 0
    %s20 = scalar_lea.sflag [#allocation8], 1
    %21 = vsyncpa %s20, 0
    %22 = vsyncpa [#allocation10], 0
    %s23 = scalar_lea.sflag [#allocation10], 1
    %24 = vsyncpa %s23, 0
    loop: start=0, step=1, limit=4
    $region2: #{tpu_custom_call.1} parent=1 // loop_pre_header
      _
    $region3: #{tpu_custom_call.1} parent=1 // loop_header
      %s26 = sphi 0, %s30
      %p27 = scmp.ge.s32.totalorder %s26, 4
      %s33 = sphi 0, %s45
      %s34 = sphi 0, %s41
      %s35 = sphi 0, %s33
      %s36 = sphi 0, %s34
      %s37 = sphi 0, %s35
      %s38 = sphi 0, %s36
      %s50 = sphi 0, %s52
      %s53 = sphi 0, %s50
      %s54 = sphi 0, %s53
      %s70 = sphi 0, %s54
      %s78 = sphi 0, %s80
      %s81 = sphi 0, %s78
      %s82 = sphi 0, %s81
      %s98 = sphi 0, %s82
      %s102 = sphi 0, %s102
      %s104 = sphi 0, %s102
      %s105 = sphi 0, %s104
      %s119 = sphi 0, %s105
      %s123 = sphi 0, %s123
      %s125 = sphi 0, %s123
      %s126 = sphi 0, %s125
      %s140 = sphi 0, %s126
      %s144 = sphi 0, %s144
      %s146 = sphi 0, %s144
      %s147 = sphi 0, %s146
      %s161 = sphi 0, %s147
      %s165 = sphi 0, %s165
      %s167 = sphi 0, %s165
      %s168 = sphi 0, %s167
      %s182 = sphi 0, %s168
      %s186 = sphi 0, %s186
      %s188 = sphi 0, %s186
      %s189 = sphi 0, %s188
      %s203 = sphi 0, %s189
      %s207 = sphi 0, %s207
      %s209 = sphi 0, %s207
      %s210 = sphi 0, %s209
      %s224 = sphi 0, %s210
      %s228 = sphi 0, %s228
      %s230 = sphi 0, %s228
      %s231 = sphi 0, %s230
      %s245 = sphi 0, %s231
      %s249 = sphi 0, %s249
      %s251 = sphi 0, %s249
      %s252 = sphi 0, %s251
      %s266 = sphi 0, %s252
      %s270 = sphi 0, %s270
      %s272 = sphi 0, %s270
      %s273 = sphi 0, %s272
      %s287 = sphi 0, %s273
      %s291 = sphi 0, %s291
      %s293 = sphi 0, %s291
      %s294 = sphi 0, %s293
      %s308 = sphi 0, %s294
      %s314 = sphi 0, %s316
      %s317 = sphi 0, %s314
      %s318 = sphi 0, %s317
      %s334 = sphi 0, %s318
    $region4: #{tpu_custom_call.1} parent=1 // loop_header_branch
      %29 = sbr.rel (%p27) target = $region8
    $region5: #{tpu_custom_call.1} parent=1 // loop_body
      %s31 = ssub.s32 %s26, 1
      %s32 = ssub.s32 %s26, 2
      %s39 = sadd.s32 1, %s34
      %p40 = scmp.ge.s32.totalorder %s39, 1
      %s41 = scalar_select %p40, 0, %s39
      %s42 = sadd.s32 1, %s33
      %s43 = scalar_select %p40, %s42, %s33
      %p44 = scmp.ge.s32.totalorder %s43, 2
      %s45 = scalar_select %p44, 0, %s43
      %s46 = ssub.s32 %s33, %s45
      %s47 = ssub.s32 %s34, %s41
      %s48 = sor.u32 %s46, %s47
      %p49 = scmp.eq.s32.totalorder %s48, 0
      %s51 = sadd.s32 %s50, 1
      %s52 = scalar_select %p49, %s50, %s51
      %p55 = pneg %p49
      %p56 = scmp.eq.s32.totalorder %s26, 1
      %p57 = por %p55, %p56
      %p58 = scmp.ne.s32.totalorder %s50, %s53
      %p59 = scmp.eq.s32.totalorder %s26, 0
      %p60 = por %p58, %p59
      %p61 = scmp.ne.s32.totalorder %s50, %s53
      %p62 = scmp.eq.s32.totalorder %s31, 1
      %p63 = por %p61, %p62
      %p64 = scmp.ne.s32.totalorder %s53, %s54
      %p65 = scmp.eq.s32.totalorder %s31, 0
      %p66 = por %p64, %p65
      %p67 = scmp.ne.s32.totalorder %s53, %s54
      %p68 = scmp.eq.s32.totalorder %s32, 1
      %p69 = por %p67, %p68
      %p71 = scmp.ne.s32.totalorder %s54, %s70
      %p72 = scmp.eq.s32.totalorder %s32, 0
      %p73 = por %p71, %p72
      %s74 = ssub.s32 %s33, %s45
      %s75 = ssub.s32 %s34, %s41
      %s76 = sor.u32 %s74, %s75
      %p77 = scmp.eq.s32.totalorder %s76, 0
      %s79 = sadd.s32 %s78, 1
      %s80 = scalar_select %p77, %s78, %s79
      %p83 = pneg %p77
      %p84 = scmp.eq.s32.totalorder %s26, 1
      %p85 = por %p83, %p84
      %p86 = scmp.ne.s32.totalorder %s78, %s81
      %p87 = scmp.eq.s32.totalorder %s26, 0
      %p88 = por %p86, %p87
      %p89 = scmp.ne.s32.totalorder %s78, %s81
      %p90 = scmp.eq.s32.totalorder %s31, 1
      %p91 = por %p89, %p90
      %p92 = scmp.ne.s32.totalorder %s81, %s82
      %p93 = scmp.eq.s32.totalorder %s31, 0
      %p94 = por %p92, %p93
      %p95 = scmp.ne.s32.totalorder %s81, %s82
      %p96 = scmp.eq.s32.totalorder %s32, 1
      %p97 = por %p95, %p96
      %p99 = scmp.ne.s32.totalorder %s82, %s98
      %p100 = scmp.eq.s32.totalorder %s32, 0
      %p101 = por %p99, %p100
      %s103 = sadd.s32 %s102, 1
      %p106 = scmp.eq.s32.totalorder %s26, 1
      %p107 = scmp.ne.s32.totalorder %s102, %s104
      %p108 = scmp.eq.s32.totalorder %s26, 0
      %p109 = por %p107, %p108
      %p110 = scmp.ne.s32.totalorder %s102, %s104
      %p111 = scmp.eq.s32.totalorder %s31, 1
      %p112 = por %p110, %p111
      %p113 = scmp.ne.s32.totalorder %s104, %s105
      %p114 = scmp.eq.s32.totalorder %s31, 0
      %p115 = por %p113, %p114
      %p116 = scmp.ne.s32.totalorder %s104, %s105
      %p117 = scmp.eq.s32.totalorder %s32, 1
      %p118 = por %p116, %p117
      %p120 = scmp.ne.s32.totalorder %s105, %s119
      %p121 = scmp.eq.s32.totalorder %s32, 0
      %p122 = por %p120, %p121
      %s124 = sadd.s32 %s123, 1
      %p127 = scmp.eq.s32.totalorder %s26, 1
      %p128 = scmp.ne.s32.totalorder %s123, %s125
      %p129 = scmp.eq.s32.totalorder %s26, 0
      %p130 = por %p128, %p129
      %p131 = scmp.ne.s32.totalorder %s123, %s125
      %p132 = scmp.eq.s32.totalorder %s31, 1
      %p133 = por %p131, %p132
      %p134 = scmp.ne.s32.totalorder %s125, %s126
      %p135 = scmp.eq.s32.totalorder %s31, 0
      %p136 = por %p134, %p135
      %p137 = scmp.ne.s32.totalorder %s125, %s126
      %p138 = scmp.eq.s32.totalorder %s32, 1
      %p139 = por %p137, %p138
      %p141 = scmp.ne.s32.totalorder %s126, %s140
      %p142 = scmp.eq.s32.totalorder %s32, 0
      %p143 = por %p141, %p142
      %s145 = sadd.s32 %s144, 1
      %p148 = scmp.eq.s32.totalorder %s26, 1
      %p149 = scmp.ne.s32.totalorder %s144, %s146
      %p150 = scmp.eq.s32.totalorder %s26, 0
      %p151 = por %p149, %p150
      %p152 = scmp.ne.s32.totalorder %s144, %s146
      %p153 = scmp.eq.s32.totalorder %s31, 1
      %p154 = por %p152, %p153
      %p155 = scmp.ne.s32.totalorder %s146, %s147
      %p156 = scmp.eq.s32.totalorder %s31, 0
      %p157 = por %p155, %p156
      %p158 = scmp.ne.s32.totalorder %s146, %s147
      %p159 = scmp.eq.s32.totalorder %s32, 1
      %p160 = por %p158, %p159
      %p162 = scmp.ne.s32.totalorder %s147, %s161
      %p163 = scmp.eq.s32.totalorder %s32, 0
      %p164 = por %p162, %p163
      %s166 = sadd.s32 %s165, 1
      %p169 = scmp.eq.s32.totalorder %s26, 1
      %p170 = scmp.ne.s32.totalorder %s165, %s167
      %p171 = scmp.eq.s32.totalorder %s26, 0
      %p172 = por %p170, %p171
      %p173 = scmp.ne.s32.totalorder %s165, %s167
      %p174 = scmp.eq.s32.totalorder %s31, 1
      %p175 = por %p173, %p174
      %p176 = scmp.ne.s32.totalorder %s167, %s168
      %p177 = scmp.eq.s32.totalorder %s31, 0
      %p178 = por %p176, %p177
      %p179 = scmp.ne.s32.totalorder %s167, %s168
      %p180 = scmp.eq.s32.totalorder %s32, 1
      %p181 = por %p179, %p180
      %p183 = scmp.ne.s32.totalorder %s168, %s182
      %p184 = scmp.eq.s32.totalorder %s32, 0
      %p185 = por %p183, %p184
      %s187 = sadd.s32 %s186, 1
      %p190 = scmp.eq.s32.totalorder %s26, 1
      %p191 = scmp.ne.s32.totalorder %s186, %s188
      %p192 = scmp.eq.s32.totalorder %s26, 0
      %p193 = por %p191, %p192
      %p194 = scmp.ne.s32.totalorder %s186, %s188
      %p195 = scmp.eq.s32.totalorder %s31, 1
      %p196 = por %p194, %p195
      %p197 = scmp.ne.s32.totalorder %s188, %s189
      %p198 = scmp.eq.s32.totalorder %s31, 0
      %p199 = por %p197, %p198
      %p200 = scmp.ne.s32.totalorder %s188, %s189
      %p201 = scmp.eq.s32.totalorder %s32, 1
      %p202 = por %p200, %p201
      %p204 = scmp.ne.s32.totalorder %s189, %s203
      %p205 = scmp.eq.s32.totalorder %s32, 0
      %p206 = por %p204, %p205
      %s208 = sadd.s32 %s207, 1
      %p211 = scmp.eq.s32.totalorder %s26, 1
      %p212 = scmp.ne.s32.totalorder %s207, %s209
      %p213 = scmp.eq.s32.totalorder %s26, 0
      %p214 = por %p212, %p213
      %p215 = scmp.ne.s32.totalorder %s207, %s209
      %p216 = scmp.eq.s32.totalorder %s31, 1
      %p217 = por %p215, %p216
      %p218 = scmp.ne.s32.totalorder %s209, %s210
      %p219 = scmp.eq.s32.totalorder %s31, 0
      %p220 = por %p218, %p219
      %p221 = scmp.ne.s32.totalorder %s209, %s210
      %p222 = scmp.eq.s32.totalorder %s32, 1
      %p223 = por %p221, %p222
      %p225 = scmp.ne.s32.totalorder %s210, %s224
      %p226 = scmp.eq.s32.totalorder %s32, 0
      %p227 = por %p225, %p226
      %s229 = sadd.s32 %s228, 1
      %p232 = scmp.eq.s32.totalorder %s26, 1
      %p233 = scmp.ne.s32.totalorder %s228, %s230
      %p234 = scmp.eq.s32.totalorder %s26, 0
      %p235 = por %p233, %p234
      %p236 = scmp.ne.s32.totalorder %s228, %s230
      %p237 = scmp.eq.s32.totalorder %s31, 1
      %p238 = por %p236, %p237
      %p239 = scmp.ne.s32.totalorder %s230, %s231
      %p240 = scmp.eq.s32.totalorder %s31, 0
      %p241 = por %p239, %p240
      %p242 = scmp.ne.s32.totalorder %s230, %s231
      %p243 = scmp.eq.s32.totalorder %s32, 1
      %p244 = por %p242, %p243
      %p246 = scmp.ne.s32.totalorder %s231, %s245
      %p247 = scmp.eq.s32.totalorder %s32, 0
      %p248 = por %p246, %p247
      %s250 = sadd.s32 %s249, 1
      %p253 = scmp.eq.s32.totalorder %s26, 1
      %p254 = scmp.ne.s32.totalorder %s249, %s251
      %p255 = scmp.eq.s32.totalorder %s26, 0
      %p256 = por %p254, %p255
      %p257 = scmp.ne.s32.totalorder %s249, %s251
      %p258 = scmp.eq.s32.totalorder %s31, 1
      %p259 = por %p257, %p258
      %p260 = scmp.ne.s32.totalorder %s251, %s252
      %p261 = scmp.eq.s32.totalorder %s31, 0
      %p262 = por %p260, %p261
      %p263 = scmp.ne.s32.totalorder %s251, %s252
      %p264 = scmp.eq.s32.totalorder %s32, 1
      %p265 = por %p263, %p264
      %p267 = scmp.ne.s32.totalorder %s252, %s266
      %p268 = scmp.eq.s32.totalorder %s32, 0
      %p269 = por %p267, %p268
      %s271 = sadd.s32 %s270, 1
      %p274 = scmp.eq.s32.totalorder %s26, 1
      %p275 = scmp.ne.s32.totalorder %s270, %s272
      %p276 = scmp.eq.s32.totalorder %s26, 0
      %p277 = por %p275, %p276
      %p278 = scmp.ne.s32.totalorder %s270, %s272
      %p279 = scmp.eq.s32.totalorder %s31, 1
      %p280 = por %p278, %p279
      %p281 = scmp.ne.s32.totalorder %s272, %s273
      %p282 = scmp.eq.s32.totalorder %s31, 0
      %p283 = por %p281, %p282
      %p284 = scmp.ne.s32.totalorder %s272, %s273
      %p285 = scmp.eq.s32.totalorder %s32, 1
      %p286 = por %p284, %p285
      %p288 = scmp.ne.s32.totalorder %s273, %s287
      %p289 = scmp.eq.s32.totalorder %s32, 0
      %p290 = por %p288, %p289
      %s292 = sadd.s32 %s291, 1
      %p295 = scmp.eq.s32.totalorder %s26, 1
      %p296 = scmp.ne.s32.totalorder %s291, %s293
      %p297 = scmp.eq.s32.totalorder %s26, 0
      %p298 = por %p296, %p297
      %p299 = scmp.ne.s32.totalorder %s291, %s293
      %p300 = scmp.eq.s32.totalorder %s31, 1
      %p301 = por %p299, %p300
      %p302 = scmp.ne.s32.totalorder %s293, %s294
      %p303 = scmp.eq.s32.totalorder %s31, 0
      %p304 = por %p302, %p303
      %p305 = scmp.ne.s32.totalorder %s293, %s294
      %p306 = scmp.eq.s32.totalorder %s32, 1
      %p307 = por %p305, %p306
      %p309 = scmp.ne.s32.totalorder %s294, %s308
      %p310 = scmp.eq.s32.totalorder %s32, 0
      %p311 = por %p309, %p310
      %s312 = ssub.s32 %s33, %s45
      %p313 = scmp.eq.s32.totalorder %s312, 0
      %s315 = sadd.s32 %s314, 1
      %s316 = scalar_select %p313, %s314, %s315
      %p319 = pneg %p313
      %p320 = scmp.eq.s32.totalorder %s26, 1
      %p321 = por %p319, %p320
      %p322 = scmp.ne.s32.totalorder %s314, %s317
      %p323 = scmp.eq.s32.totalorder %s26, 0
      %p324 = por %p322, %p323
      %p325 = scmp.ne.s32.totalorder %s314, %s317
      %p326 = scmp.eq.s32.totalorder %s31, 1
      %p327 = por %p325, %p326
      %p328 = scmp.ne.s32.totalorder %s317, %s318
      %p329 = scmp.eq.s32.totalorder %s31, 0
      %p330 = por %p328, %p329
      %p331 = scmp.ne.s32.totalorder %s317, %s318
      %p332 = scmp.eq.s32.totalorder %s32, 1
      %p333 = por %p331, %p332
      %p335 = scmp.ne.s32.totalorder %s318, %s334
      %p336 = scmp.eq.s32.totalorder %s32, 0
      %p337 = por %p335, %p336
      %p338 = scmp.le.s32.totalorder 1, %s26
      %p339 = scmp.lt.s32.totalorder %s26, 3
      %p340 = pnand %p338, %p339
      %p341 = pneg %p340
      // Predicated region
      $region9: #{tpu_custom_call.1} parent=5 // pred_check
        _
      $region10: #{tpu_custom_call.1} parent=5 // pred_check_branch
        %343 = sbr.rel (%p340) target = $region12
      $region11: #{tpu_custom_call.1} parent=5 // pred_region
        %s344 = ssub.s32 %s26, 1
        // Predicated region
        $region13: #{tpu_custom_call.1} parent=11 // pred_check
          %p345 = pneg %p115
        $region14: #{tpu_custom_call.1} parent=11 // pred_check_branch
          %347 = sbr.rel (%p345) target = $region16
        $region15: #{tpu_custom_call.1} parent=11 // pred_region
          _
        $region16: #{tpu_custom_call.1} parent=11 // pred_fallthru
          _
        // Predicated region
        $region17: #{tpu_custom_call.1} parent=11 // pred_check
          %p348 = pneg %p136
        $region18: #{tpu_custom_call.1} parent=11 // pred_check_branch
          %350 = sbr.rel (%p348) target = $region20
        $region19: #{tpu_custom_call.1} parent=11 // pred_region
          _
        $region20: #{tpu_custom_call.1} parent=11 // pred_fallthru
          _
        // Predicated region
        $region21: #{tpu_custom_call.1} parent=11 // pred_check
          %p351 = pneg %p157
        $region22: #{tpu_custom_call.1} parent=11 // pred_check_branch
          %353 = sbr.rel (%p351) target = $region24
        $region23: #{tpu_custom_call.1} parent=11 // pred_region
          _
        $region24: #{tpu_custom_call.1} parent=11 // pred_fallthru
          _
        // Predicated region
        $region25: #{tpu_custom_call.1} parent=11 // pred_check
          %p354 = pneg %p178
        $region26: #{tpu_custom_call.1} parent=11 // pred_check_branch
          %356 = sbr.rel (%p354) target = $region28
        $region27: #{tpu_custom_call.1} parent=11 // pred_region
          _
        $region28: #{tpu_custom_call.1} parent=11 // pred_fallthru
          _
        // Predicated region
        $region29: #{tpu_custom_call.1} parent=11 // pred_check
          %p357 = pneg %p199
        $region30: #{tpu_custom_call.1} parent=11 // pred_check_branch
          %359 = sbr.rel (%p357) target = $region32
        $region31: #{tpu_custom_call.1} parent=11 // pred_region
          _
        $region32: #{tpu_custom_call.1} parent=11 // pred_fallthru
          _
        // Predicated region
        $region33: #{tpu_custom_call.1} parent=11 // pred_check
          %p360 = pneg %p220
        $region34: #{tpu_custom_call.1} parent=11 // pred_check_branch
          %362 = sbr.rel (%p360) target = $region36
        $region35: #{tpu_custom_call.1} parent=11 // pred_region
          _
        $region36: #{tpu_custom_call.1} parent=11 // pred_fallthru
          _
        // Predicated region
        $region37: #{tpu_custom_call.1} parent=11 // pred_check
          %p363 = pneg %p241
        $region38: #{tpu_custom_call.1} parent=11 // pred_check_branch
          %365 = sbr.rel (%p363) target = $region40
        $region39: #{tpu_custom_call.1} parent=11 // pred_region
          _
        $region40: #{tpu_custom_call.1} parent=11 // pred_fallthru
          _
        // Predicated region
        $region41: #{tpu_custom_call.1} parent=11 // pred_check
          %p366 = pneg %p262
        $region42: #{tpu_custom_call.1} parent=11 // pred_check_branch
          %368 = sbr.rel (%p366) target = $region44
        $region43: #{tpu_custom_call.1} parent=11 // pred_region
          _
        $region44: #{tpu_custom_call.1} parent=11 // pred_fallthru
          _
        // Predicated region
        $region45: #{tpu_custom_call.1} parent=11 // pred_check
          %p369 = pneg %p283
        $region46: #{tpu_custom_call.1} parent=11 // pred_check_branch
          %371 = sbr.rel (%p369) target = $region48
        $region47: #{tpu_custom_call.1} parent=11 // pred_region
          _
        $region48: #{tpu_custom_call.1} parent=11 // pred_fallthru
          _
        // Predicated region
        $region49: #{tpu_custom_call.1} parent=11 // pred_check
          %p372 = pneg %p304
        $region50: #{tpu_custom_call.1} parent=11 // pred_check_branch
          %374 = sbr.rel (%p372) target = $region52
        $region51: #{tpu_custom_call.1} parent=11 // pred_region
          _
        $region52: #{tpu_custom_call.1} parent=11 // pred_fallthru
          _
      $region12: #{tpu_custom_call.1} parent=5 // pred_fallthru
        _
      %p375 = scmp.lt.s32.totalorder %s26, 2
      // Predicated region
      $region53: #{tpu_custom_call.1} parent=5 // pred_check
        %p376 = pneg %p375
      $region54: #{tpu_custom_call.1} parent=5 // pred_check_branch
        %378 = sbr.rel (%p376) target = $region56
      $region55: #{tpu_custom_call.1} parent=5 // pred_region
        // Predicated region
        $region57: #{tpu_custom_call.1} parent=55 // pred_check
          %p379 = pneg %p60
        $region58: #{tpu_custom_call.1} parent=55 // pred_check_branch
          %381 = sbr.rel (%p379) target = $region60
        $region59: #{tpu_custom_call.1} parent=55 // pred_region
          %s382 = sand.u32 %s50, 1
          %s383 = scalar_lea.sflag [#allocation8], %s382
          %s384 = sand.u32 %s50, 1
          %s385 = smul.addr %s384, 16
          %s386 = scalar_lea.vmem [#allocation7], %s385
          %s387 = smul.u32 2, %s34
          %389 = vsyncadd %s383, 0
          %s390 = smul.addr %s33, 2
          %s391 = sadd.s32 %s387, %s390
          %s392 = smul.addr %s391, 8
          %s393 = scalar_lea.hbm %s0, %s392
          %s395 = sshll.u32 %s393, 4
          %s396 = int_to_ptr.hbm [resolvable:$true] %s395
          %s397 = sshll.u32 %s386, 4
          %s398 = int_to_ptr.vmem [resolvable:$true] %s397
          %400 = dma.hbm_to_vmem [thread:$0]  %s396, 256, %s398, %s383
        $region60: #{tpu_custom_call.1} parent=55 // pred_fallthru
          _
        // Predicated region
        $region61: #{tpu_custom_call.1} parent=55 // pred_check
          %p401 = pneg %p88
        $region62: #{tpu_custom_call.1} parent=55 // pred_check_branch
          %403 = sbr.rel (%p401) target = $region64
        $region63: #{tpu_custom_call.1} parent=55 // pred_region
          %s404 = sand.u32 %s78, 1
          %s405 = scalar_lea.sflag [#allocation10], %s404
          %s406 = sand.u32 %s78, 1
          %s407 = smul.addr %s406, 16
          %s408 = scalar_lea.vmem [#allocation9], %s407
          %s409 = smul.u32 2, %s34
          %411 = vsyncadd %s405, 0
          %s412 = smul.addr %s33, 2
          %s413 = sadd.s32 %s409, %s412
          %s414 = smul.addr %s413, 8
          %s415 = scalar_lea.hbm %s1, %s414
          %s417 = sshll.u32 %s415, 4
          %s418 = int_to_ptr.hbm [resolvable:$true] %s417
          %s419 = sshll.u32 %s408, 4
          %s420 = int_to_ptr.vmem [resolvable:$true] %s419
          %422 = dma.hbm_to_vmem [thread:$0]  %s418, 256, %s420, %s405
        $region64: #{tpu_custom_call.1} parent=55 // pred_fallthru
          _
      $region56: #{tpu_custom_call.1} parent=5 // pred_fallthru
        _
      %p423 = scmp.le.s32.totalorder 1, %s26
      %p424 = scmp.lt.s32.totalorder %s26, 3
      %p425 = pnand %p423, %p424
      %p426 = pneg %p425
      // Predicated region
      $region65: #{tpu_custom_call.1} parent=5 // pred_check
        _
      $region66: #{tpu_custom_call.1} parent=5 // pred_check_branch
        %428 = sbr.rel (%p425) target = $region68
      $region67: #{tpu_custom_call.1} parent=5 // pred_region
        %s429 = ssub.s32 %s26, 1
        %s430 = sand.u32 %s53, 1
        %s431 = scalar_lea.sflag [#allocation8], %s430
        %s432 = sand.u32 %s53, 1
        %s433 = smul.addr %s432, 16
        %s434 = scalar_lea.vmem [#allocation7], %s433
        // Predicated region
        $region69: #{tpu_custom_call.1} parent=67 // pred_check
          %p435 = pneg %p66
        $region70: #{tpu_custom_call.1} parent=67 // pred_check_branch
          %437 = sbr.rel (%p435) target = $region72
        $region71: #{tpu_custom_call.1} parent=67 // pred_region
          %439 = dma.done %s431, 256
        $region72: #{tpu_custom_call.1} parent=67 // pred_fallthru
          _
        %s440 = sand.u32 %s81, 1
        %s441 = scalar_lea.sflag [#allocation10], %s440
        %s442 = sand.u32 %s81, 1
        %s443 = smul.addr %s442, 16
        %s444 = scalar_lea.vmem [#allocation9], %s443
        // Predicated region
        $region73: #{tpu_custom_call.1} parent=67 // pred_check
          %p445 = pneg %p94
        $region74: #{tpu_custom_call.1} parent=67 // pred_check_branch
          %447 = sbr.rel (%p445) target = $region76
        $region75: #{tpu_custom_call.1} parent=67 // pred_region
          %449 = dma.done %s441, 256
        $region76: #{tpu_custom_call.1} parent=67 // pred_fallthru
          _
        %s450 = sand.u32 %s53, 1
        %s451 = scalar_lea.sflag [#allocation8], %s450
        %s452 = sand.u32 %s53, 1
        %s453 = smul.addr %s452, 16
        %s454 = scalar_lea.vmem [#allocation7], %s453
        %p455 = pneg %p66
        %p456 = pneg %p63
        %s457 = sand.u32 %s81, 1
        %s458 = scalar_lea.sflag [#allocation10], %s457
        %s459 = sand.u32 %s81, 1
        %s460 = smul.addr %s459, 16
        %s461 = scalar_lea.vmem [#allocation9], %s460
        %p462 = pneg %p94
        %p463 = pneg %p91
        %p464 = pneg %p115
        %p465 = pneg %p112
        %p466 = pneg %p136
        %p467 = pneg %p133
        %p468 = pneg %p157
        %p469 = pneg %p154
        %p470 = pneg %p178
        %p471 = pneg %p175
        %p472 = pneg %p199
        %p473 = pneg %p196
        %p474 = pneg %p220
        %p475 = pneg %p217
        %p476 = pneg %p241
        %p477 = pneg %p238
        %p478 = pneg %p262
        %p479 = pneg %p259
        %p480 = pneg %p283
        %p481 = pneg %p280
        %p482 = pneg %p304
        %p483 = pneg %p301
        %p484 = pneg %p330
        %p485 = pneg %p327
        %p486 = scmp.lt.s32.totalorder %s35, 1
        %s487 = scalar_select %p486, %s35, 1
        %s488 = smul.addr %s487, 8
        %s489 = scalar_lea.vmem %s12, %s488
        %s490 = smul.u32 2, %s36
        %s491 = smul.u32 2, %s36
        %p492 = scmp.lt.s32.totalorder %s35, 1
        %s493 = scalar_select %p492, %s35, 1
        %s494 = smul.addr %s493, 8
        %s495 = scalar_lea.vmem %s12, %s494
        %p496 = scmp.eq.s32.totalorder %s36, 0
        // Predicated region
        $region77: #{tpu_custom_call.1} parent=67 // pred_check
          %p497 = pneg %p496
        $region78: #{tpu_custom_call.1} parent=67 // pred_check_branch
          %499 = sbr.rel (%p497) target = $region80
        $region79: #{tpu_custom_call.1} parent=67 // pred_region
          %vm500 = vcmask 0
          %501 = vst.msk [vmem:[#allocation2] sm:$0x1] %vm500, -inf
          %502 = vst.msk [vmem:[#allocation3] sm:$0x1] %vm500, 0.0
          %vm503 = vcmask 7168
          %504 = vst.msk [vmem:[#allocation4] sm:$0xff] %vm503, 0.0
          %505 = vst.msk [vmem:[#allocation5] sm:$0xff] %vm503, 0.0
        $region80: #{tpu_custom_call.1} parent=67 // pred_fallthru
          _
        %v506 = vld [vmem:[%s434] sm:$0xff]
        %v507 = vld [vmem:[%s434 + $0x8] sm:$0xff]
        %v508 = vld [vmem:[%s444] sm:$0xff]
        %v509 = vld [vmem:[%s444 + $0x8] sm:$0xff]
        %v510 = vld [vmem:[%s2] sm:$0xff]
        %512 = vset.pattern.permute.xlu0 0
        %513 = vperm.xlu0 %512, %v510
        %v514 = vpop.permute.xlu0 %513
        %v516 = vmul.f32 %v506, %v514
        %v517 = vmul.f32 %v507, %v514
        %v518 = vrot.slane %v516, 4
        %v519 = vadd.f32 %v516, %v518
        %v520 = vrot.slane %v519, 2
        %v521 = vadd.f32 %v519, %v520
        %v522 = vrot.slane %v521, 1
        %v523 = vadd.f32 %v521, %v522
        %v524 = vrot.slane %v517, 4
        %v525 = vadd.f32 %v517, %v524
        %v526 = vrot.slane %v525, 2
        %v527 = vadd.f32 %v525, %v526
        %v528 = vrot.slane %v527, 1
        %v529 = vadd.f32 %v527, %v528
        %v530 = vld [vmem:[%s3] sm:$0xff]
        %532 = vset.pattern.permute.xlu0 0
        %533 = vperm.xlu0 %532, %v530
        %v534 = vpop.permute.xlu0 %533
        %v536 = vmul.f32 %v508, %v534
        %v537 = vmul.f32 %v509, %v534
        %v538 = vrot.slane %v536, 4
        %v539 = vadd.f32 %v536, %v538
        %v540 = vrot.slane %v539, 2
        %v541 = vadd.f32 %v539, %v540
        %v542 = vrot.slane %v541, 1
        %v543 = vadd.f32 %v541, %v542
        %v544 = vrot.slane %v537, 4
        %v545 = vadd.f32 %v537, %v544
        %v546 = vrot.slane %v545, 2
        %v547 = vadd.f32 %v545, %v546
        %v548 = vrot.slane %v547, 1
        %v549 = vadd.f32 %v547, %v548
        %v550 = vadd.f32 %v523, %v543
        %v551 = vadd.f32 %v529, %v549
        %v552 = vld [vmem:[#allocation6] sm:$0x1]
        %554 = vset.pattern.permute.xlu0 0
        %555 = vperm.xlu0 %554, %v552
        %v556 = vpop.permute.xlu0 %555
        %v558 = vperm.slane %v556, 0
        %v559 = vadd.f32 %v550, %v558
        %v560 = vadd.f32 %v551, %v558
        %v561 = vld [vmem:[#allocation2] sm:$0x1]
        %v562 = vmax.f32 %v559, %v560
        %563 = vmax.xlane.f32.xlu0 %v562
        %v564 = vpop.xlane.xlu0 %563
        %v565 = vmax.f32 %v561, %v564
        %v566 = vsub.f32 %v561, %v565
        %v567 = vmul.f32 %v566, 1.442695
        %v568 = vpow.pop %v567
        %570 = vset.pattern.permute.xlu0 0
        %571 = vperm.xlu0 %570, %v565
        %v572 = vpop.permute.xlu0 %571
        %v574 = vperm.slane %v572, 0
        %v575 = vsub.f32 %v559, %v574
        %v576 = vsub.f32 %v560, %v574
        %v577 = vmul.f32 %v575, 1.442695
        %v578 = vpow.pop %v577
        %v579 = vmul.f32 %v576, 1.442695
        %v580 = vpow.pop %v579
        %v581 = vld [vmem:[#allocation3] sm:$0x1]
        %v582 = vmul.f32 %v568, %v581
        %v583 = vadd.f32 %v578, %v580
        %584 = vadd.xlane.f32.xlu0 %v583
        %v585 = vpop.xlane.xlu0 %584
        %v586 = vadd.f32 %v582, %v585
        %vm587 = vcmask 0
        %588 = vst.msk [vmem:[#allocation3] sm:$0x1] %vm587, %v586
        %589 = vst.msk [vmem:[#allocation2] sm:$0x1] %vm587, %v565
        %v590 = vmul.f32 %v506, %v578
        %v591 = vmul.f32 %v507, %v580
        %v592 = vld [vmem:[#allocation4] sm:$0xff]
        %v594 = vperm.slane %v568, 0
        %v596 = vmul.f32 %v594, %v592
        %v597 = vadd.f32 %v590, %v591
        %598 = vadd.xlane.f32.xlu0 %v597
        %v599 = vpop.xlane.xlu0 %598
        %v600 = vadd.f32 %v596, %v599
        %vm601 = vcmask 7168
        %602 = vst.msk [vmem:[#allocation4] sm:$0xff] %vm601, %v600
        %v603 = vmul.f32 %v508, %v578
        %v604 = vmul.f32 %v509, %v580
        %v605 = vld [vmem:[#allocation5] sm:$0xff]
        %v606 = vmul.f32 %v594, %v605
        %v607 = vadd.f32 %v603, %v604
        %608 = vadd.xlane.f32.xlu0 %v607
        %v609 = vpop.xlane.xlu0 %608
        %v610 = vadd.f32 %v606, %v609
        %611 = vst.msk [vmem:[#allocation5] sm:$0xff] %vm601, %v610
        // Predicated region
        $region81: #{tpu_custom_call.1} parent=67 // pred_check
          %p612 = pneg %p496
        $region82: #{tpu_custom_call.1} parent=67 // pred_check_branch
          %614 = sbr.rel (%p612) target = $region84
        $region83: #{tpu_custom_call.1} parent=67 // pred_region
          %v615 = vld [vmem:[#allocation3] sm:$0x1]
          %v616 = vrcp.pop %v615
          %v617 = vmul.f32 %v615, %v616
          %v618 = vsub.f32 1.0, %v617
          %v619 = vmul.f32 %v616, %v618
          %v620 = vadd.f32 %v616, %v619
          %vm621 = vweird.f32 %v615
          %vm622 = vweird.f32 %v616
          %vm623 = vmor %vm621, %vm622
          %v624 = vsel %vm623, %v616, %v620
          %v625 = vand.u32 2147483647, %v615
          %vm626 = vcmp.eq.f32.partialorder %v625, 8.507059e+37
          %v627 = vand.u32 %v615, 2147483648
          %v628 = vor.u32 1.1754944e-38, %v627
          %v629 = vsel %vm626, %v628, %v624
          %v630 = vld [vmem:[%s7] sm:$0x1]
          %v631 = vld [vmem:[#allocation4] sm:$0xff]
          %v633 = vperm.slane %v629, 0
          %v635 = vmul.f32 %v631, %v633
          %v636 = vld [vmem:[%s4] sm:$0xff]
          %638 = vset.pattern.permute.xlu0 0
          %639 = vperm.xlu0 %638, %v635
          %v640 = vpop.permute.xlu0 %639
          %v642 = vmul.f32 %v640, %v636
          %vm643 = vcmask 31744
          %v644 = vsel %vm643, %v642, 0.0
          %v645 = vrot.slane %v644, 4
          %v646 = vadd.f32 %v644, %v645
          %v647 = vrot.slane %v646, 2
          %v648 = vadd.f32 %v646, %v647
          %v649 = vrot.slane %v648, 1
          %v650 = vadd.f32 %v648, %v649
          %v651 = vadd.f32 %v630, %v650
          %v652 = vld [vmem:[#allocation5] sm:$0xff]
          %v653 = vmul.f32 %v652, %v633
          %v654 = vld [vmem:[%s5] sm:$0xff]
          %656 = vset.pattern.permute.xlu0 0
          %657 = vperm.xlu0 %656, %v653
          %v658 = vpop.permute.xlu0 %657
          %v660 = vmul.f32 %v658, %v654
          %v661 = vsel %vm643, %v660, 0.0
          %v662 = vrot.slane %v661, 4
          %v663 = vadd.f32 %v661, %v662
          %v664 = vrot.slane %v663, 2
          %v665 = vadd.f32 %v663, %v664
          %v666 = vrot.slane %v665, 1
          %v667 = vadd.f32 %v665, %v666
          %v668 = vadd.f32 %v651, %v667
          %vm669 = vcmask 24576
          %v670 = vsel %vm669, %v668, 0.0
          %671 = vadd.xlane.f32.xlu0 %v670
          %v672 = vpop.xlane.xlu0 %671
          %v673 = vrcp.pop 4.0
          %v674 = vmul.f32 4.0, %v673
          %v675 = vsub.f32 1.0, %v674
          %v676 = vmul.f32 %v673, %v675
          %v677 = vadd.f32 %v673, %v676
          %vm678 = vweird.f32 %v673
          %v679 = vsel %vm678, %v673, %v677
          %v680 = vmul.f32 %v672, %v679
          %v681 = vsub.f32 %v668, %v680
          %v682 = vmul.f32 %v681, %v681
          %v683 = vsel %vm669, %v682, 0.0
          %684 = vadd.xlane.f32.xlu0 %v683
          %v685 = vpop.xlane.xlu0 %684
          %v686 = vmul.f32 %v685, %v679
          %v687 = vadd.f32 %v686, 1e-05
          %v688 = vrsqrt.pop %v687
          %v689 = vmul.f32 %v688, %v687
          %v690 = vmul.f32 %v689, %v688
          %v691 = vmul.f32 0.5, %v690
          %v692 = vsub.f32 1.5, %v691
          %v693 = vmul.f32 %v688, %v692
          %vm694 = vweird.f32 %v687
          %vm695 = vweird.f32 %v688
          %vm696 = vmor %vm694, %vm695
          %v697 = vsel %vm696, %v688, %v693
          %v698 = vmul.f32 %v681, %v697
          %v699 = vld [vmem:[%s8] sm:$0x1]
          %v700 = vmul.f32 %v698, %v699
          %v701 = vld [vmem:[%s9] sm:$0x1]
          %v702 = vadd.f32 %v700, %v701
          %v703 = vmax.f32 %v702, 0.0
          %v704 = vld [vmem:[%s10] sm:$0xff]
          %v706 = vperm.slane %v703, 0
          %v708 = vmul.f32 %v704, %v706
          %v709 = vsel %vm643, %v708, 0.0
          %710 = vadd.xlane.f32.xlu0 %v709
          %v711 = vpop.xlane.xlu0 %710
          %v712 = vld [vmem:[%s11] sm:$0xff]
          %v713 = vadd.f32 %v711, %v712
          %714 = vst.msk [vmem:[%s495] sm:$0xff] %vm601, %v713
        $region84: #{tpu_custom_call.1} parent=67 // pred_fallthru
          _
        %p715 = scmp.lt.s32.totalorder %s35, 1
        %s716 = scalar_select %p715, %s35, 1
        %s717 = smul.addr %s716, 8
        %s718 = scalar_lea.vmem %s12, %s717
        // Predicated region
        $region85: #{tpu_custom_call.1} parent=67 // pred_check
          %p719 = pneg %p327
        $region86: #{tpu_custom_call.1} parent=67 // pred_check_branch
          %721 = sbr.rel (%p719) target = $region88
        $region87: #{tpu_custom_call.1} parent=67 // pred_region
          _
        $region88: #{tpu_custom_call.1} parent=67 // pred_fallthru
          _
      $region68: #{tpu_custom_call.1} parent=5 // pred_fallthru
        _
      %p722 = scmp.le.s32.totalorder 2, %s26
      // Predicated region
      $region89: #{tpu_custom_call.1} parent=5 // pred_check
        %p723 = pneg %p722
      $region90: #{tpu_custom_call.1} parent=5 // pred_check_branch
        %725 = sbr.rel (%p723) target = $region92
      $region91: #{tpu_custom_call.1} parent=5 // pred_region
        %s726 = ssub.s32 %s26, 2
        // Predicated region
        $region93: #{tpu_custom_call.1} parent=91 // pred_check
          %p727 = pneg %p333
        $region94: #{tpu_custom_call.1} parent=91 // pred_check_branch
          %729 = sbr.rel (%p727) target = $region96
        $region95: #{tpu_custom_call.1} parent=91 // pred_region
          %p730 = scmp.lt.s32.totalorder %s37, 1
          %s731 = scalar_select %p730, %s37, 1
          %s732 = smul.addr %s731, 8
          %s733 = scalar_lea.vmem %s12, %s732
        $region96: #{tpu_custom_call.1} parent=91 // pred_fallthru
          _
      $region92: #{tpu_custom_call.1} parent=5 // pred_fallthru
        _
    $region6: #{tpu_custom_call.1} parent=1 // loop_footer
      %s30 = sadd.s32 1, %s26
    $region7: #{tpu_custom_call.1} parent=1 // loop_footer_branch
      %25 = sbr.rel target = $region3
    $region8: #{tpu_custom_call.1} parent=1 // loop_exit
      _
    %734 = vsyncpa [#allocation8], 1
    %s735 = scalar_lea.sflag [#allocation8], 1
    %736 = vsyncpa %s735, 1
    %737 = vsyncpa [#allocation10], 1
    %s738 = scalar_lea.sflag [#allocation10], 1
    %739 = vsyncpa %s738, 1

</llo_original>
